<compile_context>
chip_gen: v6e
topology: v6e:2x2x1
jax: 0.10.0
libtpu: 0.0.40
codegen_flags: <defaults>
</compile_context>

<pallas_src>
import functools
import numpy as np

import jax
import jax.numpy as jnp
from jax.experimental import pallas as pl
from jax.experimental.pallas import tpu as pltpu


# ---------------------------------------------------------------------------
# Helpers
# ---------------------------------------------------------------------------
def _round_up(x, m):
    return ((x + m - 1) // m) * m


def _pick_tn(npad, requested):
    """Largest multiple of 128 that divides `npad` and is <= requested."""
    requested = max(128, (requested // 128) * 128)
    if npad <= requested:
        return npad
    best = 128
    d = 256
    while d <= requested:
        if npad % d == 0:
            best = d
        d += 128
    return best


def _vmem_cap_bytes():
    """Per-core VMEM capacity minus headroom for Mosaic internal scratch."""
    cap = 64 * 2 ** 20                    # conservative default (v7x)
    try:
        cap = int(pltpu.get_tpu_info().vmem_capacity_bytes)
    except Exception:
        pass
    return max(min(cap - 8 * 2 ** 20, 120 * 2 ** 20), 32 * 2 ** 20)


# ---------------------------------------------------------------------------
# Kernels
# ---------------------------------------------------------------------------
def _dist_kernel_resident_1h(compute_dtype, x_ref, w_ref, b_ref, o_ref):
    # mse / binary / onehot: raw mean / logits.  x cast to bf16 in-kernel.
    acc = jnp.dot(x_ref[...].astype(compute_dtype), w_ref[...],
                  preferred_element_type=jnp.float32) + b_ref[...]
    o_ref[...] = acc.astype(o_ref.dtype)


def _dist_kernel_resident_2h(dist, init_std, min_std, npad, compute_dtype,
                             x_ref, w_ref, b_ref, o_mean_ref, o_std_ref):
    # One Ncat-wide matmul; split the two heads with static lane-aligned slices.
    acc = jnp.dot(x_ref[...].astype(compute_dtype), w_ref[...],
                  preferred_element_type=jnp.float32) + b_ref[...]
    m_acc = acc[:, :npad]
    s_acc = acc[:, npad:]
    if dist == "tanh_normal":
        mean = 5.0 * jnp.tanh(m_acc / 5.0)
        std = jax.nn.softplus(s_acc + init_std) + min_std
    elif dist == "trunc_normal":
        mean = jnp.tanh(m_acc)
        std = 2.0 * jax.nn.sigmoid((s_acc + init_std) / 2.0) + min_std
    else:  # 'normal' — spec uses the raw linear std head.
        mean, std = m_acc, s_acc
    o_mean_ref[...] = mean.astype(o_mean_ref.dtype)
    o_std_ref[...] = std.astype(o_std_ref.dtype)


def _dist_kernel_tiled(dist, init_std, min_std, two_headed, compute_dtype,
                       x_ref, w_ref, b_ref, o_ref):
    # Fallback for non-resident weights.  Grid = (n_tiles, m_tiles): the N axis
    # is OUTER so each weight tile is fetched from HBM exactly once.
    acc = jnp.dot(x_ref[...].astype(compute_dtype), w_ref[...],
                  preferred_element_type=jnp.float32) + b_ref[...]

    if (not two_headed) or dist == "normal":
        o_ref[...] = acc.astype(o_ref.dtype)
        return

    j = pl.program_id(0)
    half = pl.num_programs(0) // 2

    @pl.when(j < half)
    def _():
        if dist == "tanh_normal":
            mean = 5.0 * jnp.tanh(acc / 5.0)
        else:  # trunc_normal
            mean = jnp.tanh(acc)
        o_ref[...] = mean.astype(o_ref.dtype)

    @pl.when(j >= half)
    def _():
        if dist == "tanh_normal":
            std = jax.nn.softplus(acc + init_std) + min_std
        else:  # trunc_normal
            std = 2.0 * jax.nn.sigmoid((acc + init_std) / 2.0) + min_std
        o_ref[...] = std.astype(o_ref.dtype)


# ---------------------------------------------------------------------------
# One-time parameter prep (hoisted layout plumbing: pad / concat / cast)
# ---------------------------------------------------------------------------
_VALID_DISTS = ("mse", "normal", "binary", "tanh_normal", "trunc_normal",
                "onehot")


def prepare_dist_params(params, out_shape, dist, *, compute_dtype=jnp.bfloat16):
    """Builds the fused, lane-padded, compute-dtype weight/bias once."""
    if dist not in _VALID_DISTS:
        raise NotImplementedError(f"Got invalid distribution layer name: '{dist}'")
    w_out, b_out, w_std, b_std = params           # w_*: (K, N), b_*: (N,)
    K = int(w_out.shape[0])
    N = int(np.prod(out_shape, dtype=int))
    Npad = _round_up(max(N, 1), 128)
    needs_std = dist in ("normal", "tanh_normal", "trunc_normal")

    def _pad_wb(w, b):
        w = jnp.asarray(w).reshape(K, N)
        b = jnp.asarray(b).reshape(1, N)
        if Npad != N:
            w = jnp.pad(w, ((0, 0), (0, Npad - N)))
            b = jnp.pad(b, ((0, 0), (0, Npad - N)))
        return w, b

    wo, bo = _pad_wb(w_out, b_out)
    if needs_std:
        ws, bs = _pad_wb(w_std, b_std)
        w_cat = jnp.concatenate([wo, ws], axis=1)     # (K, 2*Npad)
        b_cat = jnp.concatenate([bo, bs], axis=1)     # (1, 2*Npad)
    else:
        w_cat, b_cat = wo, bo                         # (K, Npad)

    w_cat = w_cat.astype(compute_dtype)
    b_cat = b_cat.astype(jnp.float32)
    return dict(w_cat=w_cat, b_cat=b_cat, K=K, N=N, Npad=Npad,
                Ncat=int(w_cat.shape[1]), needs_std=needs_std, dist=dist,
                out_shape=tuple(out_shape), compute_dtype=compute_dtype)


# ---------------------------------------------------------------------------
# Forward
# ---------------------------------------------------------------------------
def dist_layer_forward(x, prepared, *, min_std=0.1, init_std=0.0,
                       tm=512, tn=2048, force_tiled=False):
    """DistLayer.forward distribution parameters.

    mse / binary / onehot -> out (mean or logits), shape (*batch, *out_shape)
    normal / tanh_normal / trunc_normal -> (mean, std), each (*batch, *out_shape)
    """
    dist = prepared["dist"]
    needs_std = prepared["needs_std"]
    K, N = prepared["K"], prepared["N"]
    Npad, Ncat = prepared["Npad"], prepared["Ncat"]
    w_cat, b_cat = prepared["w_cat"], prepared["b_cat"]
    compute_dtype = prepared["compute_dtype"]
    out_shape = prepared["out_shape"]

    batch_shape = x.shape[:-1]
    assert x.shape[-1] == K, f"expected last dim {K}, got {x.shape[-1]}"
    M = int(np.prod(batch_shape, dtype=int)) if batch_shape else 1
    out_dtype = x.dtype

    # f32 x straight into the kernel; cast to bf16 happens next to the matmul.
    x2 = x.reshape(M, K)

    cb = jnp.dtype(compute_dtype).itemsize
    xb = jnp.dtype(x.dtype).itemsize
    ob = jnp.dtype(out_dtype).itemsize

    tm_eff = max(8, (min(int(tm), _round_up(M, 8)) // 8) * 8)
    grid_m = (M + tm_eff - 1) // tm_eff
    cap = _vmem_cap_bytes()
    n_heads = 2 if needs_std else 1

    # ---------- resident-weight path (typical DistLayer shapes) ------------
    w_bytes = K * Ncat * cb
    resident_est = (w_bytes + Ncat * 4                      # resident W + bias
                    + 2 * tm_eff * K * xb                   # x stream (2-buf)
                    + 2 * n_heads * tm_eff * Npad * ob      # output stream(s)
                    + tm_eff * Ncat * 4                     # f32 accumulator
                    + tm_eff * K * cb                       # in-kernel x cast
                    + n_heads * tm_eff * Npad * 4)          # transform temps
    use_resident = (not force_tiled) and (1.5 * resident_est <= 0.9 * cap)

    if use_resident:
        vmem_limit = int(min(max(1.5 * resident_est, 32 * 2 ** 20), cap))
        x_spec = pl.BlockSpec((tm_eff, K), lambda i: (i, 0))
        w_spec = pl.BlockSpec((K, Ncat), lambda i: (0, 0))    # VMEM-resident
        b_spec = pl.BlockSpec((1, Ncat), lambda i: (0, 0))
        o_spec = pl.BlockSpec((tm_eff, Npad), lambda i: (i, 0))

        if needs_std:
            kernel = functools.partial(_dist_kernel_resident_2h, dist,
                                       float(init_std), float(min_std),
                                       Npad, compute_dtype)
            out_sds = (jax.ShapeDtypeStruct((M, Npad), out_dtype),
                       jax.ShapeDtypeStruct((M, Npad), out_dtype))
            out_specs = [o_spec, o_spec]
        else:
            kernel = functools.partial(_dist_kernel_resident_1h, compute_dtype)
            out_sds = jax.ShapeDtypeStruct((M, Npad), out_dtype)
            out_specs = o_spec

        result = pl.pallas_call(
            kernel,
            out_shape=out_sds,
            grid_spec=pltpu.PrefetchScalarGridSpec(
                num_scalar_prefetch=0, grid=(grid_m,),
                in_specs=[x_spec, w_spec, b_spec],
                out_specs=out_specs),
            compiler_params=pltpu.CompilerParams(
                dimension_semantics=("parallel",),
                vmem_limit_bytes=vmem_limit),
        )(x2, w_cat, b_cat)

        if needs_std:
            mean_pad, std_pad = result
            mean = mean_pad if Npad == N else mean_pad[:, :N]
            std = std_pad if Npad == N else std_pad[:, :N]
            return (mean.reshape(batch_shape + out_shape),
                    std.reshape(batch_shape + out_shape))
        out = result if Npad == N else result[:, :N]
        return out.reshape(batch_shape + out_shape)

    # ---------- tiled fallback (weights too large to hold in VMEM) ---------
    tn_eff = _pick_tn(Npad, int(tn))
    assert Npad % tn_eff == 0
    grid_n = Ncat // tn_eff
    if needs_std:
        assert grid_n % 2 == 0, "mean/std split requires an even N-tile count"

    tiled_est = (2 * K * tn_eff * cb + 2 * tn_eff * 4       # W/b tiles (2-buf)
                 + 2 * tm_eff * K * xb                      # x stream
                 + 2 * tm_eff * tn_eff * ob                 # output stream
                 + tm_eff * tn_eff * 4                      # f32 accumulator
                 + tm_eff * K * cb                          # x cast
                 + tm_eff * tn_eff * 4)                     # transform temps
    vmem_limit = int(min(max(1.5 * tiled_est, 32 * 2 ** 20), cap))

    x_spec = pl.BlockSpec((tm_eff, K), lambda j, i: (i, 0))
    w_spec = pl.BlockSpec((K, tn_eff), lambda j, i: (0, j))  # fetched once per j
    b_spec = pl.BlockSpec((1, tn_eff), lambda j, i: (0, j))
    o_spec = pl.BlockSpec((tm_eff, tn_eff), lambda j, i: (i, j))

    kernel = functools.partial(_dist_kernel_tiled, dist, float(init_std),
                               float(min_std), needs_std, compute_dtype)

    result = pl.pallas_call(
        kernel,
        out_shape=jax.ShapeDtypeStruct((M, Ncat), out_dtype),
        grid_spec=pltpu.PrefetchScalarGridSpec(
            num_scalar_prefetch=0, grid=(grid_n, grid_m),
            in_specs=[x_spec, w_spec, b_spec],
            out_specs=o_spec),
        compiler_params=pltpu.CompilerParams(
            dimension_semantics=("parallel", "parallel"),
            vmem_limit_bytes=vmem_limit),
    )(x2, w_cat, b_cat)

    if needs_std:
        mean = result[:, :N].reshape(batch_shape + out_shape)
        std = result[:, Npad:Npad + N].reshape(batch_shape + out_shape)
        return mean, std
    return result[:, :N].reshape(batch_shape + out_shape)
    # TODO(synk): sampling / log_prob / entropy / mode of the
    # torch.distributions objects are host-side distribution plumbing, not
    # kernel compute; only the parameter-producing forward pass is implemented.


# ---------------------------------------------------------------------------
# Pure-JAX reference (f32) for a sanity check
# ---------------------------------------------------------------------------
def _reference(x, params, out_shape, dist, min_std, init_std):
    w_out, b_out, w_std, b_std = params
    batch_shape = x.shape[:-1]
    xf = x.astype(jnp.float32).reshape(-1, x.shape[-1])
    out = (xf @ w_out + b_out).reshape(batch_shape + tuple(out_shape))
    if dist in ("normal", "tanh_normal", "trunc_normal"):
        std = (xf @ w_std + b_std).reshape(batch_shape + tuple(out_shape))
    if dist == "tanh_normal":
        return 5 * jnp.tanh(out / 5), jax.nn.softplus(std + init_std) + min_std
    if dist == "trunc_normal":
        return jnp.tanh(out), 2 * jax.nn.sigmoid((std + init_std) / 2) + min_std
    if dist == "normal":
        return out, std
    return out


# ---------------------------------------------------------------------------
if __name__ == "__main__":
    INP = 32
    OUT_SHAPE = (4, 4)
    N = int(np.prod(OUT_SHAPE))
    MIN_STD, INIT_STD = 0.1, 0.0

    key = jax.random.PRNGKey(0)
    kx, kx2, kwo, kbo, kws, kbs = jax.random.split(key, 6)

    # nn.Linear-style init U(-1/sqrt(in), 1/sqrt(in)), stored transposed (K, N).
    bound = 1.0 / np.sqrt(INP)
    w_out = jax.random.uniform(kwo, (INP, N), jnp.float32, -bound, bound)
    b_out = jax.random.uniform(kbo, (N,), jnp.float32, -bound, bound)
    w_std = jax.random.uniform(kws, (INP, N), jnp.float32, -bound, bound)
    b_std = jax.random.uniform(kbs, (N,), jnp.float32, -bound, bound)
    params = (w_out, b_out, w_std, b_std)

    # One-time parameter prep (hoisted concat/pad/cast) per dist config.
    prep_tanh = prepare_dist_params(params, OUT_SHAPE, "tanh_normal")
    prep_trunc = prepare_dist_params(params, OUT_SHAPE, "trunc_normal")
    prep_normal = prepare_dist_params(params, OUT_SHAPE, "normal")
    prep_mse = prepare_dist_params(params, OUT_SHAPE, "mse")

    # Two-headed path (tanh_normal) on (batch=2, seq=8).
    x = jax.random.normal(kx, (2, 8, INP), jnp.float32)
    mean, std = dist_layer_forward(x, prep_tanh, min_std=MIN_STD,
                                   init_std=INIT_STD)
    jax.block_until_ready((mean, std))

    # trunc_normal exercises the sigmoid branch.
    tmean, tstd = dist_layer_forward(x, prep_trunc, min_std=MIN_STD,
                                     init_std=INIT_STD)
    jax.block_until_ready((tmean, tstd))

    # normal exercises the identity two-head branch.
    nmean, nstd = dist_layer_forward(x, prep_normal, min_std=MIN_STD,
                                     init_std=INIT_STD)
    jax.block_until_ready((nmean, nstd))

    # One-headed path (mse) on a shape that exercises ragged-M grid masking.
    x_odd = jax.random.normal(kx2, (3, 5, INP), jnp.float32)
    mse_mean = dist_layer_forward(x_odd, prep_mse)
    jax.block_until_ready(mse_mean)

    # Exercise the tiled fallback path explicitly (large-weight code path).
    fmean, fstd = dist_layer_forward(x, prep_tanh, min_std=MIN_STD,
                                     init_std=INIT_STD, force_tiled=True)
    jax.block_until_ready((fmean, fstd))

    ref_mean, ref_std = _reference(x, params, OUT_SHAPE, "tanh_normal",
                                   MIN_STD, INIT_STD)
    ref_tmean, ref_tstd = _reference(x, params, OUT_SHAPE, "trunc_normal",
                                     MIN_STD, INIT_STD)
    ref_nmean, ref_nstd = _reference(x, params, OUT_SHAPE, "normal",
                                     MIN_STD, INIT_STD)
    ref_mse = _reference(x_odd, params, OUT_SHAPE, "mse", MIN_STD, INIT_STD)

    assert mean.shape == (2, 8) + OUT_SHAPE
    assert std.shape == (2, 8) + OUT_SHAPE
    assert mse_mean.shape == (3, 5) + OUT_SHAPE

    # bf16 MXU inputs with f32 accumulation -> ~1e-2 relative error budget.
    TOL = dict(atol=2e-2, rtol=2e-2)
    assert jnp.allclose(mean, ref_mean, **TOL)
    assert jnp.allclose(std, ref_std, **TOL)
    assert jnp.allclose(tmean, ref_tmean, **TOL)
    assert jnp.allclose(tstd, ref_tstd, **TOL)
    assert jnp.allclose(nmean, ref_nmean, **TOL)
    assert jnp.allclose(nstd, ref_nstd, **TOL)
    assert jnp.allclose(mse_mean, ref_mse, **TOL)
    assert jnp.allclose(fmean, ref_mean, **TOL)
    assert jnp.allclose(fstd, ref_std, **TOL)

    print("KERNEL_OK")
</pallas_src>

<mosaic_0001>
module attributes {stable_mosaic.version = 11 : i64} {
  func.func @_dist_kernel_resident_2h(%arg0: i32, %arg1: memref<16x32xf32, #tpu.memory_space<vmem>>, %arg2: memref<32x256xbf16, #tpu.memory_space<vmem>>, %arg3: memref<1x256xf32, #tpu.memory_space<vmem>>, %arg4: memref<16x128xf32, #tpu.memory_space<vmem>>, %arg5: memref<16x128xf32, #tpu.memory_space<vmem>>) attributes {dimension_semantics = [#tpu.dimension_semantics<parallel>], iteration_bounds = array<i64: 1>, scalar_prefetch = 0 : i64, scratch_operands = 0 : i64, tpu.core_type = #tpu.core_type<tc>, window_params = [{transform_indices = @transform_0, window_bounds = array<i64: 16, 32>}, {pipeline_mode = #tpu.pipeline_mode<synchronous>, transform_indices = @transform_1, window_bounds = array<i64: 32, 256>}, {pipeline_mode = #tpu.pipeline_mode<synchronous>, transform_indices = @transform_2, window_bounds = array<i64: 1, 256>}, {transform_indices = @transform_3, window_bounds = array<i64: 16, 128>}, {transform_indices = @transform_4, window_bounds = array<i64: 16, 128>}]} {
    %c0 = arith.constant 0 : index
    %c0_0 = arith.constant 0 : index
    %0 = vector.load %arg1[%c0, %c0_0] : memref<16x32xf32, #tpu.memory_space<vmem>>, vector<16x32xf32>
    %1 = arith.truncf %0 : vector<16x32xf32> to vector<16x32xbf16>
    %c0_1 = arith.constant 0 : index
    %c0_2 = arith.constant 0 : index
    %2 = vector.load %arg2[%c0_1, %c0_2] : memref<32x256xbf16, #tpu.memory_space<vmem>>, vector<32x256xbf16>
    %cst = arith.constant dense<0.000000e+00> : vector<16x256xf32>
    %3 = tpu.matmul %1, %2, %cst {dimension_numbers = #tpu.dot_dimension_numbers<[1], [0], [0], [1], [0, 0, 1, 1], [], []>} : vector<16x32xbf16>, vector<32x256xbf16>, vector<16x256xf32> -> vector<16x256xf32>
    %c0_3 = arith.constant 0 : index
    %c0_4 = arith.constant 0 : index
    %4 = vector.load %arg3[%c0_3, %c0_4] : memref<1x256xf32, #tpu.memory_space<vmem>>, vector<1x256xf32>
    %5 = vector.broadcast %4 : vector<1x256xf32> to vector<16x256xf32>
    %6 = arith.addf %3, %5 : vector<16x256xf32>
    %7 = vector.extract_strided_slice %6 {offsets = [0, 0], sizes = [16, 128], strides = [1, 1]} : vector<16x256xf32> to vector<16x128xf32>
    %8 = vector.extract_strided_slice %6 {offsets = [0, 128], sizes = [16, 128], strides = [1, 1]} : vector<16x256xf32> to vector<16x128xf32>
    %cst_5 = arith.constant 5.000000e+00 : f32
    %9 = vector.broadcast %cst_5 : f32 to vector<16x128xf32>
    %10 = arith.divf %7, %9 : vector<16x128xf32>
    %11 = math.tanh %10 : vector<16x128xf32>
    %cst_6 = arith.constant 5.000000e+00 : f32
    %12 = vector.broadcast %cst_6 : f32 to vector<16x128xf32>
    %13 = arith.mulf %12, %11 : vector<16x128xf32>
    %cst_7 = arith.constant 0.000000e+00 : f32
    %14 = vector.broadcast %cst_7 : f32 to vector<16x128xf32>
    %15 = arith.addf %8, %14 : vector<16x128xf32>
    %cst_8 = arith.constant 0.000000e+00 : f32
    %16 = vector.broadcast %cst_8 : f32 to vector<16x128xf32>
    %17 = arith.maximumf %15, %16 : vector<16x128xf32>
    %18 = vector.broadcast %cst_8 : f32 to vector<16x128xf32>
    %19 = arith.subf %15, %18 : vector<16x128xf32>
    %20 = arith.cmpf one, %19, %19 : vector<16x128xf32>
    %21 = vector.broadcast %cst_8 : f32 to vector<16x128xf32>
    %22 = arith.addf %15, %21 : vector<16x128xf32>
    %23 = math.absf %19 : vector<16x128xf32>
    %cst_9 = arith.constant 0.000000e+00 : f32
    %24 = vector.broadcast %cst_9 : f32 to vector<16x128xf32>
    %25 = arith.subf %24, %23 : vector<16x128xf32>
    %26 = math.exp %25 : vector<16x128xf32>
    %27 = math.log1p %26 : vector<16x128xf32>
    %28 = arith.addf %17, %27 : vector<16x128xf32>
    %29 = arith.select %20, %22, %28 : vector<16x128xi1>, vector<16x128xf32>
    %cst_10 = arith.constant 1.000000e-01 : f32
    %30 = vector.broadcast %cst_10 : f32 to vector<16x128xf32>
    %31 = arith.addf %29, %30 : vector<16x128xf32>
    %c0_11 = arith.constant 0 : index
    %c0_12 = arith.constant 0 : index
    %32 = vector.load %arg4[%c0_11, %c0_12] : memref<16x128xf32, #tpu.memory_space<vmem>>, vector<16x128xf32>
    tpu.vector_store %arg4[%c0_11, %c0_12], %13 {strides = array<i32>} : memref<16x128xf32, #tpu.memory_space<vmem>>, vector<16x128xf32>,
    %c0_13 = arith.constant 0 : index
    %c0_14 = arith.constant 0 : index
    %33 = vector.load %arg5[%c0_13, %c0_14] : memref<16x128xf32, #tpu.memory_space<vmem>>, vector<16x128xf32>
    tpu.vector_store %arg5[%c0_13, %c0_14], %31 {strides = array<i32>} : memref<16x128xf32, #tpu.memory_space<vmem>>, vector<16x128xf32>,
    return
  }
  func.func @transform_0(%arg0: i32) -> (i32, i32) {
    %c0_i32 = arith.constant 0 : i32
    %c0_i32_0 = arith.constant 0 : i32
    return %arg0, %c0_i32 : i32, i32
  }
  func.func @transform_1(%arg0: i32) -> (i32, i32) {
    %c0_i32 = arith.constant 0 : i32
    %c0_i32_0 = arith.constant 0 : i32
    %c0_i32_1 = arith.constant 0 : i32
    return %c0_i32, %c0_i32_0 : i32, i32
  }
  func.func @transform_2(%arg0: i32) -> (i32, i32) {
    %c0_i32 = arith.constant 0 : i32
    %c0_i32_0 = arith.constant 0 : i32
    %c0_i32_1 = arith.constant 0 : i32
    return %c0_i32, %c0_i32_0 : i32, i32
  }
  func.func @transform_3(%arg0: i32) -> (i32, i32) {
    %c0_i32 = arith.constant 0 : i32
    %c0_i32_0 = arith.constant 0 : i32
    return %arg0, %c0_i32 : i32, i32
  }
  func.func @transform_4(%arg0: i32) -> (i32, i32) {
    %c0_i32 = arith.constant 0 : i32
    %c0_i32_0 = arith.constant 0 : i32
    return %arg0, %c0_i32 : i32, i32
  }
}

</mosaic_0001>

<llo_original>
// kernel: tpu_custom_call.1
$region0: #{tpu_custom_call.1}
  #allocation0 [shape = 'u32[]', space=smem, size = 0x4, offset = 0x4, fixed_abs, tag = 'smem constant byte address 0x4 - core index']
  #allocation1 [shape = 'u32[144,128]{1,0:T(1,128)}', space=vmem, size = 0x12000, scoped, tag = 'internal scratch']
  %s0 = inlined_call_operand.hbm [shape: f32[16,32], index: 0, kind: input, shape index: {}]
  %s1 = inlined_call_operand.hbm [shape: bf16[32,256], index: 1, kind: input, shape index: {}]
  %s2 = inlined_call_operand.vmem [shape: f32[1,256], index: 2, kind: input, shape index: {}]
  %s3 = inlined_call_operand.hbm [shape: f32[16,128], index: 3, kind: output, shape index: {0}]
  %s4 = inlined_call_operand.hbm [shape: f32[16,128], index: 4, kind: output, shape index: {1}]
  %5 = xla_tuple %s3, %s4
  %s6 = sld [smem:[#allocation0]]
  $region38: #{tpu_custom_call.1} parent=0
    _
  %s8 = ssub.s32 1, %s6
  %s9 = scalar_select 0, %s8, %s6
  $region1: #{tpu_custom_call.1} parent=0
    #allocation2 [shape = 'u8[8192]{0}', space=vmem, size = 0x2000, scoped, tag = 'input window, operand 0, single buffered']
    #allocation3 [shape = 's32[1]{0}', space=sflag, size = 0x4, scoped, tag = 'scoped memory for tpu_custom_call.1']
    #allocation4 [shape = 's32[1]{0}', space=sflag, size = 0x4, scoped, tag = 'scoped memory for tpu_custom_call.1']
    #allocation5 [shape = 'u8[16384]{0}', space=vmem, size = 0x4000, scoped, tag = 'input window, operand 1, single buffered']
    #allocation6 [shape = 's32[1]{0}', space=sflag, size = 0x4, scoped, tag = 'scoped memory for tpu_custom_call.1']
    #allocation7 [shape = 'u8[8192]{0}', space=vmem, size = 0x2000, scoped, tag = 'output window, operand 0, single buffered']
    #allocation8 [shape = 'u8[8192]{0}', space=vmem, size = 0x2000, scoped, tag = 'output window, operand 1, single buffered']
    #allocation9 [shape = 's32[1]{0}', space=sflag, size = 0x4, scoped, tag = 'scoped memory for tpu_custom_call.1']
    %10 = vsyncpa [#allocation3], 0
    %11 = vsyncpa [#allocation6], 0
    %12 = vsyncpa [#allocation4], 0
    %13 = vsyncpa [#allocation9], 0
    // Predicated region
    $region2: #{tpu_custom_call.1} parent=1 // pred_check
      _
    $region3: #{tpu_custom_call.1} parent=1 // pred_check_branch
      %15 = sbr.rel (0) target = $region5
    $region4: #{tpu_custom_call.1} parent=1 // pred_region
      %s17 = ssub.s32 256, 256
      %18 = vsyncadd [#allocation3], %s17
      %s19 = sshll.u32 [#allocation2], 4
      %s20 = int_to_ptr.vmem [resolvable:$true] %s19
      %25 = dma.hbm_to_vmem [thread:$0]  %s0, 256, %s20, [#allocation3], 128, 128, 8
    $region5: #{tpu_custom_call.1} parent=1 // pred_fallthru
      _
    // Predicated region
    $region6: #{tpu_custom_call.1} parent=1 // pred_check
      _
    $region7: #{tpu_custom_call.1} parent=1 // pred_check_branch
      %27 = sbr.rel (0) target = $region9
    $region8: #{tpu_custom_call.1} parent=1 // pred_region
      %s29 = ssub.s32 512, 512
      %30 = vsyncadd [#allocation6], %s29
      %s31 = sshll.u32 [#allocation5], 4
      %s32 = int_to_ptr.vmem [resolvable:$true] %s31
      %37 = dma.hbm_to_vmem [thread:$0]  %s1, 512, %s32, [#allocation6], 128, 128, 8
    $region9: #{tpu_custom_call.1} parent=1 // pred_fallthru
      _
    // Predicated region
    $region10: #{tpu_custom_call.1} parent=1 // pred_check
      _
    $region11: #{tpu_custom_call.1} parent=1 // pred_check_branch
      %39 = sbr.rel (0) target = $region13
    $region12: #{tpu_custom_call.1} parent=1 // pred_region
      _
    $region13: #{tpu_custom_call.1} parent=1 // pred_fallthru
      _
    // Predicated region
    $region14: #{tpu_custom_call.1} parent=1 // pred_check
      _
    $region15: #{tpu_custom_call.1} parent=1 // pred_check_branch
      %41 = sbr.rel (0) target = $region17
    $region16: #{tpu_custom_call.1} parent=1 // pred_region
      %42 = dma.done [#allocation3], 256
    $region17: #{tpu_custom_call.1} parent=1 // pred_fallthru
      _
    // Predicated region
    $region18: #{tpu_custom_call.1} parent=1 // pred_check
      _
    $region19: #{tpu_custom_call.1} parent=1 // pred_check_branch
      %44 = sbr.rel (0) target = $region21
    $region20: #{tpu_custom_call.1} parent=1 // pred_region
      %45 = dma.done [#allocation6], 512
    $region21: #{tpu_custom_call.1} parent=1 // pred_fallthru
      _
    %v47 = vld [vmem:[#allocation2] sm:$0xff]
    %v48 = vld [vmem:[#allocation2 + $0x8] sm:$0xff]
    %v49 = vpack.c.bf16 %v48, %v47
    %v50 = vld [vmem:[#allocation5] sm:$0xff]
    %v51 = vld [vmem:[#allocation5 + $0x8] sm:$0xff]
    %v52 = vld [vmem:[#allocation5 + $0x10] sm:$0xff]
    %v53 = vld [vmem:[#allocation5 + $0x18] sm:$0xff]
    %v54 = vld [vmem:[%s2] sm:$0x3]
    %v56 = vlaneseq
    %v57 = vshrl.u32 %v56, 7
    %v58 = vsub.s32 0, %v57
    %v59 = vrot.slane %v54, %v58
    %v60 = vlaneseq
    %v61 = vshrl.u32 %v60, 7
    %v62 = vsub.s32 1, %v61
    %v63 = vrot.slane %v54, %v62
    %v70 = vunpack.c.l.b16 %v50
    %v71 = vunpack.c.h.b16 %v50
    %v72 = vunpack.c.l.b16 %v51
    %v73 = vunpack.c.h.b16 %v51
    %v74 = vunpack.c.l.b16 %v52
    %v75 = vunpack.c.h.b16 %v52
    %v76 = vunpack.c.l.b16 %v53
    %v77 = vunpack.c.h.b16 %v53
    %v78 = vpack.c.b16 %v72, %v70
    %v79 = vpack.c.b16 %v73, %v71
    %v80 = vpack.c.b16 %v76, %v74
    %v81 = vpack.c.b16 %v77, %v75
    %vm86 = vcmask 261120
    %v88 = vsel %vm86, %v49, 0
    %90 = vmatprep.subr.bf16.mxu0 0
    %91 = vmatpush1.bf16.msra.mxu0 0
    %92 = vmatprep.subr.bf16.mxu0 0
    %93 = vmatpush1.bf16.msra.mxu0 0
    %94 = vmatprep.subr.bf16.mxu0 0
    %95 = vmatpush1.bf16.msra.mxu0 0
    %96 = vmatprep.subr.bf16.mxu0 0
    %97 = vmatpush1.bf16.msra.mxu0 0
    %98 = vmatprep.subr.bf16.mxu0 0
    %99 = vmatpush1.bf16.msra.mxu0 0
    %100 = vmatprep.subr.bf16.mxu0 0
    %101 = vmatpush1.bf16.msra.mxu0 0
    %102 = vmatprep.subr.bf16.mxu0 %v81
    %103 = vmatpush1.bf16.msra.mxu0 %v80
    %104 = vmatprep.subr.bf16.mxu0 %v79
    %105 = vmatpush1.bf16.msra.mxu0 %v78
    %106 = vmatprep.subr.bf16.mxu0 0
    %107 = vmatpush2.bf16.msra.mxu0 0
    %108 = vmatprep.subr.bf16.mxu0 0
    %109 = vmatpush2.bf16.msra.mxu0 0
    %110 = vmatprep.subr.bf16.mxu0 0
    %111 = vmatpush2.bf16.msra.mxu0 0
    %112 = vmatprep.subr.bf16.mxu0 0
    %113 = vmatpush2.bf16.msra.mxu0 0
    %114 = vmatprep.subr.bf16.mxu0 0
    %115 = vmatpush2.bf16.msra.mxu0 0
    %116 = vmatprep.subr.bf16.mxu0 0
    %117 = vmatpush2.bf16.msra.mxu0 0
    %118 = vmatprep.subr.bf16.mxu0 0
    %119 = vmatpush2.bf16.msra.mxu0 0
    %120 = vmatprep.subr.bf16.mxu0 0
    %121 = vmatpush2.bf16.msra.mxu0 0
    %122 = vmatprep.mubr.bf16.mxu0 0
    %123 = vmatmul.mubr.bf16.gmra.mxu0 %v88
    %v124 = vpop.f32.mrf.mxu0
    %v125 = vadd.f32 %v59, %v124
    %v126 = vpop.f32.mrf.mxu0
    %v127 = vadd.f32 %v63, %v126
    %v128 = vpop.f32.mrf.mxu0
    %v129 = vadd.f32 %v59, %v128
    %v130 = vpop.f32.mrf.mxu0
    %v131 = vadd.f32 %v63, %v130
    %132 = vdwg.mxu0
    %v133 = vrcp.pop 5.0
    %v134 = vmul.f32 %v125, %v133
    %v135 = vmul.f32 %v129, %v133
    %v136 = vtanh.pop %v134
    %v137 = vtanh.pop %v135
    %v138 = vmul.f32 %v136, 5.0
    %v139 = vmul.f32 %v137, 5.0
    %v140 = vadd.f32 %v127, 0.0
    %v141 = vadd.f32 %v131, 0.0
    %v142 = vmax.f32 %v140, 0.0
    %v143 = vmax.f32 %v141, 0.0
    %vm144 = vcmp.ne.f32.partialorder %v140, %v140
    %vm145 = vcmp.ne.f32.partialorder %v141, %v141
    %v146 = vadd.f32 %v140, 0.0
    %v147 = vadd.f32 %v141, 0.0
    %v148 = vand.u32 2147483647, %v140
    %v149 = vand.u32 2147483647, %v141
    %v150 = vsub.f32 0.0, %v148
    %v151 = vsub.f32 0.0, %v149
    %v152 = vmul.f32 %v150, 1.442695
    %v153 = vpow.pop %v152
    %v154 = vmul.f32 %v151, 1.442695
    %v155 = vpow.pop %v154
    %v156 = vadd.f32 %v153, 1.0
    %v157 = vlog2.pop %v156
    %v158 = vmul.f32 %v157, 0.6931472
    %v159 = vmul.f32 -0.5, %v153
    %v160 = vadd.f32 %v159, 1.0
    %v161 = vmul.f32 %v160, %v153
    %v162 = vand.u32 2147483647, %v153
    %vm163 = vcmp.lt.f32.partialorder %v162, 0.0004427343
    %v164 = vsel %vm163, %v161, %v158
    %v165 = vadd.f32 %v155, 1.0
    %v166 = vlog2.pop %v165
    %v167 = vmul.f32 %v166, 0.6931472
    %v168 = vmul.f32 -0.5, %v155
    %v169 = vadd.f32 %v168, 1.0
    %v170 = vmul.f32 %v169, %v155
    %v171 = vand.u32 2147483647, %v155
    %vm172 = vcmp.lt.f32.partialorder %v171, 0.0004427343
    %v173 = vsel %vm172, %v170, %v167
    %v174 = vadd.f32 %v142, %v164
    %v175 = vadd.f32 %v143, %v173
    %v176 = vsel %vm144, %v146, %v174
    %v177 = vsel %vm145, %v147, %v175
    %v178 = vadd.f32 %v176, 0.1
    %v179 = vadd.f32 %v177, 0.1
    %180 = vst [vmem:[#allocation7] sm:$0xff] %v138
    %181 = vst [vmem:[#allocation7 + $0x8] sm:$0xff] %v139
    %182 = vst [vmem:[#allocation8] sm:$0xff] %v178
    %183 = vst [vmem:[#allocation8 + $0x8] sm:$0xff] %v179
    // Predicated region
    $region22: #{tpu_custom_call.1} parent=1 // pred_check
      _
    $region23: #{tpu_custom_call.1} parent=1 // pred_check_branch
      %185 = sbr.rel (0) target = $region25
    $region24: #{tpu_custom_call.1} parent=1 // pred_region
      %s187 = ssub.s32 256, 256
      %188 = vsyncadd [#allocation4], %s187
      %s189 = sshll.u32 [#allocation7], 4
      %s190 = int_to_ptr.vmem [resolvable:$true] %s189
      %195 = dma.vmem_to_hbm [thread:$0]  %s190, 256, %s3, [#allocation4], 128, 128, 8
    $region25: #{tpu_custom_call.1} parent=1 // pred_fallthru
      _
    // Predicated region
    $region26: #{tpu_custom_call.1} parent=1 // pred_check
      _
    $region27: #{tpu_custom_call.1} parent=1 // pred_check_branch
      %197 = sbr.rel (0) target = $region29
    $region28: #{tpu_custom_call.1} parent=1 // pred_region
      %s199 = ssub.s32 256, 256
      %200 = vsyncadd [#allocation9], %s199
      %s201 = sshll.u32 [#allocation8], 4
      %s202 = int_to_ptr.vmem [resolvable:$true] %s201
      %207 = dma.vmem_to_hbm [thread:$0]  %s202, 256, %s4, [#allocation9], 128, 128, 8
    $region29: #{tpu_custom_call.1} parent=1 // pred_fallthru
      _
    // Predicated region
    $region30: #{tpu_custom_call.1} parent=1 // pred_check
      _
    $region31: #{tpu_custom_call.1} parent=1 // pred_check_branch
      %209 = sbr.rel (0) target = $region33
    $region32: #{tpu_custom_call.1} parent=1 // pred_region
      %210 = dma.done [#allocation4], 256
    $region33: #{tpu_custom_call.1} parent=1 // pred_fallthru
      _
    // Predicated region
    $region34: #{tpu_custom_call.1} parent=1 // pred_check
      _
    $region35: #{tpu_custom_call.1} parent=1 // pred_check_branch
      %212 = sbr.rel (0) target = $region37
    $region36: #{tpu_custom_call.1} parent=1 // pred_region
      %213 = dma.done [#allocation9], 256
    $region37: #{tpu_custom_call.1} parent=1 // pred_fallthru
      _
    %214 = vsyncpa [#allocation3], 1
    %215 = vsyncpa [#allocation6], 1
    %216 = vsyncpa [#allocation4], 1
    %217 = vsyncpa [#allocation9], 1

</llo_original>
